<compile_context>
chip_gen: v5e
topology: v5e:2x2
jax: 0.10.0
libtpu: 0.0.40
codegen_flags: <defaults>
</compile_context>

<pallas_src>
import jax
import jax.numpy as jnp
from jax.experimental import pallas as pl
from jax.experimental.pallas import tpu as pltpu


def _make_router_kernel(noise_std, with_noise):
    noise_std = float(noise_std)

    def _router_kernel(x_ref, w_ref, b_ref, *rest):
        if with_noise:
            noise_ref, probs_ref, idx_ref = rest
        else:
            probs_ref, idx_ref = rest

        # logits^T = W @ x^T : both operands contracted on their LAST dim (the
        # standard q.k^T MXU pattern).  Result is (E, TB): experts in the
        # sublane axis, tokens lane-dense.  Accumulate in f32.
        logits_t = jax.lax.dot_general(
            w_ref[...], x_ref[...],
            dimension_numbers=(((1,), (1,)), ((), ())),
            preferred_element_type=jnp.float32)
        logits_t = logits_t + b_ref[...]                       # (E, 1) bias

        if with_noise:
            logits_t = logits_t + jnp.float32(noise_std) * noise_ref[...].astype(
                jnp.float32)

        e, tb = logits_t.shape
        expert = jax.lax.broadcasted_iota(jnp.int32, (e, tb), 0)
        neg_inf = jnp.float32(-jnp.inf)

        # Top-1 / top-2 over the expert (sublane) axis; first index on ties.
        m1 = jnp.max(logits_t, axis=0, keepdims=True)                    # (1, TB)
        i1 = jnp.min(jnp.where(logits_t == m1, expert, e), axis=0, keepdims=True)
        masked = jnp.where(expert == i1, neg_inf, logits_t)
        m2 = jnp.max(masked, axis=0, keepdims=True)
        i2 = jnp.min(jnp.where(masked == m2, expert, e), axis=0, keepdims=True)

        # Softmax over the two kept logits; zero elsewhere.
        # exp(m1 - m1) = 1, exp(m2 - m1) = p2.  Exact normalization (the
        # divide is on a (1, TB) row -> cheap).
        p2 = jnp.exp(m2 - m1)
        inv = 1.0 / (1.0 + p2)
        probs = jnp.where(expert == i1, inv,
                          jnp.where(expert == i2, p2 * inv, 0.0))

        probs_ref[...] = probs.astype(probs_ref.dtype)
        idx_ref[...] = jnp.concatenate([i1, i2], axis=0).astype(jnp.int32)

    return _router_kernel


def _choose_token_tile(n_tokens, d, e, x_itemsize, *, cap_tokens=1024,
                       vmem_budget_bytes=20 * 1024 * 1024):
    """Token tile length TB (tokens live in the lane axis -> multiples of 128)."""
    n_tokens = int(n_tokens)
    if n_tokens <= 128:
        return n_tokens
    e_pad = max(int(e), 8)
    # Per-token VMEM: double-buffered x tile, double-buffered (E,TB)/(2,TB)
    # output tiles (sublane-padded), and ~8 live (E_pad, TB) f32 temporaries.
    per_token = (2 * int(d) * int(x_itemsize)
                 + 2 * (e_pad + 2) * 4
                 + 8 * e_pad * 4)
    cap = max(128, min(int(cap_tokens), vmem_budget_bytes // per_token))
    # >= 2 blocks and an even block count -> the "parallel" token axis splits
    # evenly across the 2 TensorCores on v7x.
    n_blocks = max(2, -(-n_tokens // cap))
    n_blocks += n_blocks % 2
    tb = -(-n_tokens // n_blocks)
    tb = ((tb + 127) // 128) * 128
    return int(min(tb, n_tokens))


def dynamic_router(x, weight, bias, *, noise_std=0.1, key=None, top_k=2,
                   block_tokens=None):
    """x: (B, D); weight: (E, D) (PyTorch nn.Linear layout); bias: (E,).

    Returns (router_output (B, E) f32, top_k_indices (B, 2) i32).
    """
    assert top_k == 2, "kernel is specialized for top_k=2"
    B, D = x.shape
    E, D2 = weight.shape
    assert D2 == D and E >= 2

    # Keep the dominant x stream in its incoming dtype; only the small
    # resident weight is cast (once) to match it.
    w = weight.astype(x.dtype)
    b_col = bias.reshape(E, 1).astype(jnp.float32)

    with_noise = (float(noise_std) != 0.0)
    if with_noise:
        if key is None:
            key = jax.random.PRNGKey(0)
        # Host-generated Gaussian noise, already in the kernel's (E, B) layout.
        noise_t = jax.random.normal(key, (E, B), dtype=jnp.float32)

    if block_tokens is None:
        TB = _choose_token_tile(B, D, E, jnp.dtype(x.dtype).itemsize)
    else:
        TB = int(min(block_tokens, B))
    num_blocks = int(pl.cdiv(B, TB))

    in_specs = [
        pl.BlockSpec((TB, D), lambda i: (i, 0)),   # x: token-tiled, pipelined
        pl.BlockSpec((E, D), lambda i: (0, 0)),    # weight: resident
        pl.BlockSpec((E, 1), lambda i: (0, 0)),    # bias: resident
    ]
    args = [x, w, b_col]
    if with_noise:
        in_specs.append(pl.BlockSpec((E, TB), lambda i: (0, i)))  # noise tile
        args.append(noise_t)

    probs_t, idx_t = pl.pallas_call(
        _make_router_kernel(noise_std, with_noise),
        out_shape=(
            jax.ShapeDtypeStruct((E, B), jnp.float32),     # lane-dense probs^T
            jax.ShapeDtypeStruct((top_k, B), jnp.int32),   # lane-dense idx^T
        ),
        grid=(num_blocks,),
        in_specs=in_specs,
        out_specs=(
            pl.BlockSpec((E, TB), lambda i: (0, i)),
            pl.BlockSpec((top_k, TB), lambda i: (0, i)),
        ),
        compiler_params=pltpu.CompilerParams(
            dimension_semantics=("parallel",),      # megacore sharding on v7x
            vmem_limit_bytes=48 * 1024 * 1024,      # < v7x 64 MiB physical
        ),
    )(*args)

    # Tiny wrapper-side layout fixes back to the module's (B, E) / (B, top_k).
    return probs_t.T, idx_t.T


def _check_against_reference(probs, idx, logits_ref, tol=5e-3):
    """Exact check vs. a pure-JAX reference; rows whose top-2/top-3 gap is tiny
    are excluded (MXU-vs-XLA rounding can legitimately flip them)."""
    B, E = logits_ref.shape
    vals3, idx3 = jax.lax.top_k(logits_ref, 3)
    stable = (vals3[:, 1] - vals3[:, 2]) > 1e-2
    idx_ref = idx3[:, :2]
    sparse = jnp.full_like(logits_ref, -jnp.inf).at[
        jnp.arange(B)[:, None], idx_ref].set(vals3[:, :2])
    probs_ref = jax.nn.softmax(sparse, axis=-1)
    same_idx = jnp.all(jnp.sort(idx, -1) == jnp.sort(idx_ref, -1), axis=-1)
    close = jnp.all(jnp.abs(probs - probs_ref) <= tol, axis=-1)
    ok = jnp.where(stable, same_idx & close, True)
    assert bool(jnp.all(ok)), "router output mismatch vs reference"


def _structural_checks(probs, idx, n_experts):
    B = probs.shape[0]
    rows = jnp.arange(B)[:, None]
    assert bool(jnp.all((idx >= 0) & (idx < n_experts))), "indices out of range"
    assert bool(jnp.all(idx[:, 0] != idx[:, 1])), "duplicate top-k indices"
    assert bool(jnp.allclose(probs.sum(-1), 1.0, atol=5e-3)), "rows not normalized"
    picked = probs[rows, idx]
    assert bool(jnp.all(picked > 0.0)), "selected experts got zero probability"
    assert bool(jnp.allclose(picked.sum(-1), probs.sum(-1), atol=1e-5)), \
        "probability mass outside top-k"
    assert bool(jnp.all(picked[:, 0] >= picked[:, 1] - 1e-6)), "top-1 < top-2"


if __name__ == "__main__":
    # Small deterministic example: 512 tokens, hidden 32, 8 experts, top_k 2.
    # The tile chooser picks TB=256 -> 2 pipelined grid steps.
    B, D, E, TOP_K = 512, 32, 8, 2

    key = jax.random.PRNGKey(0)
    k_x, k_w, k_b, k_n = jax.random.split(key, 4)
    x = jax.random.normal(k_x, (B, D), dtype=jnp.float32)
    # nn.Linear(input_dim, num_experts): weight (E, D), bias (E,)
    weight = jax.random.normal(k_w, (E, D), dtype=jnp.float32) / jnp.sqrt(D)
    bias = jax.random.normal(k_b, (E,), dtype=jnp.float32) * 0.01

    logits_clean = x @ weight.T + bias

    # 1) Noiseless path: exact reference check.
    probs, idx = dynamic_router(x, weight, bias, noise_std=0.0)
    jax.block_until_ready((probs, idx))
    _check_against_reference(probs, idx, logits_clean)
    _structural_checks(probs, idx, E)

    # 2) Noisy path: noise is an explicit (host-generated) input, so it is
    #    exactly reproducible and checkable against the same reference math.
    probs_n, idx_n = dynamic_router(x, weight, bias, noise_std=0.1, key=k_n)
    jax.block_until_ready((probs_n, idx_n))
    noise_t = jax.random.normal(k_n, (E, B), dtype=jnp.float32)
    _check_against_reference(probs_n, idx_n, logits_clean + 0.1 * noise_t.T)
    _structural_checks(probs_n, idx_n, E)

    # 3) bf16 token stream pass-through (dominant HBM stream stays bf16).
    probs_b, idx_b = dynamic_router(x.astype(jnp.bfloat16), weight, bias,
                                    noise_std=0.0)
    jax.block_until_ready((probs_b, idx_b))
    _structural_checks(probs_b, idx_b, E)

    print("KERNEL_OK")
</pallas_src>

<mosaic_0001>
module attributes {stable_mosaic.version = 11 : i64} {
  func.func @_router_kernel(%arg0: i32, %arg1: memref<256x32xf32, #tpu.memory_space<vmem>>, %arg2: memref<8x32xf32, #tpu.memory_space<vmem>>, %arg3: memref<8x1xf32, #tpu.memory_space<vmem>>, %arg4: memref<8x256xf32, #tpu.memory_space<vmem>>, %arg5: memref<2x256xi32, #tpu.memory_space<vmem>>) attributes {dimension_semantics = [#tpu.dimension_semantics<parallel>], iteration_bounds = array<i64: 2>, scalar_prefetch = 0 : i64, scratch_operands = 0 : i64, tpu.core_type = #tpu.core_type<tc>, window_params = [{transform_indices = @transform_0, window_bounds = array<i64: 256, 32>}, {pipeline_mode = #tpu.pipeline_mode<synchronous>, transform_indices = @transform_1, window_bounds = array<i64: 8, 32>}, {pipeline_mode = #tpu.pipeline_mode<synchronous>, transform_indices = @transform_2, window_bounds = array<i64: 8, 1>}, {transform_indices = @transform_3, window_bounds = array<i64: 8, 256>}, {transform_indices = @transform_4, window_bounds = array<i64: 2, 256>}]} {
    %c0 = arith.constant 0 : index
    %c0_0 = arith.constant 0 : index
    %0 = vector.load %arg2[%c0, %c0_0] : memref<8x32xf32, #tpu.memory_space<vmem>>, vector<8x32xf32>
    %c0_1 = arith.constant 0 : index
    %c0_2 = arith.constant 0 : index
    %1 = vector.load %arg1[%c0_1, %c0_2] : memref<256x32xf32, #tpu.memory_space<vmem>>, vector<256x32xf32>
    %cst = arith.constant dense<0.000000e+00> : vector<8x256xf32>
    %2 = tpu.matmul %0, %1, %cst {dimension_numbers = #tpu.dot_dimension_numbers<[1], [1], [0], [0], [0, 0, 1, 0], [], []>} : vector<8x32xf32>, vector<256x32xf32>, vector<8x256xf32> -> vector<8x256xf32>
    %c0_3 = arith.constant 0 : index
    %c0_4 = arith.constant 0 : index
    %3 = vector.load %arg3[%c0_3, %c0_4] : memref<8x1xf32, #tpu.memory_space<vmem>>, vector<8x1xf32>
    %4 = vector.broadcast %3 : vector<8x1xf32> to vector<8x256xf32>
    %5 = arith.addf %2, %4 : vector<8x256xf32>
    %6 = tpu.iota {dimensions = array<i32: 0>} : vector<8x256xi32>
    %cst_5 = arith.constant dense<0xFF800000> : vector<256xf32>
    %7 = vector.multi_reduction <maximumf>, %5, %cst_5 [0] : vector<8x256xf32> to vector<256xf32>
    %8 = vector.shape_cast %7 : vector<256xf32> to vector<1x256xf32>
    %9 = vector.broadcast %8 : vector<1x256xf32> to vector<8x256xf32>
    %10 = arith.cmpf oeq, %5, %9 : vector<8x256xf32>
    %c8_i32 = arith.constant 8 : i32
    %11 = vector.broadcast %c8_i32 : i32 to vector<8x256xi32>
    %12 = arith.select %10, %6, %11 : vector<8x256xi1>, vector<8x256xi32>
    %cst_6 = arith.constant dense<2147483647> : vector<256xi32>
    %13 = vector.multi_reduction <minsi>, %12, %cst_6 [0] : vector<8x256xi32> to vector<256xi32>
    %14 = vector.shape_cast %13 : vector<256xi32> to vector<1x256xi32>
    %15 = vector.broadcast %14 : vector<1x256xi32> to vector<8x256xi32>
    %16 = arith.cmpi eq, %6, %15 : vector<8x256xi32>
    %cst_7 = arith.constant 0xFF800000 : f32
    %17 = vector.broadcast %cst_7 : f32 to vector<8x256xf32>
    %18 = arith.select %16, %17, %5 : vector<8x256xi1>, vector<8x256xf32>
    %cst_8 = arith.constant dense<0xFF800000> : vector<256xf32>
    %19 = vector.multi_reduction <maximumf>, %18, %cst_8 [0] : vector<8x256xf32> to vector<256xf32>
    %20 = vector.shape_cast %19 : vector<256xf32> to vector<1x256xf32>
    %21 = vector.broadcast %20 : vector<1x256xf32> to vector<8x256xf32>
    %22 = arith.cmpf oeq, %18, %21 : vector<8x256xf32>
    %c8_i32_9 = arith.constant 8 : i32
    %23 = vector.broadcast %c8_i32_9 : i32 to vector<8x256xi32>
    %24 = arith.select %22, %6, %23 : vector<8x256xi1>, vector<8x256xi32>
    %cst_10 = arith.constant dense<2147483647> : vector<256xi32>
    %25 = vector.multi_reduction <minsi>, %24, %cst_10 [0] : vector<8x256xi32> to vector<256xi32>
    %26 = vector.shape_cast %25 : vector<256xi32> to vector<1x256xi32>
    %27 = arith.subf %20, %8 : vector<1x256xf32>
    %28 = math.exp %27 : vector<1x256xf32>
    %cst_11 = arith.constant 1.000000e+00 : f32
    %29 = vector.broadcast %cst_11 : f32 to vector<1x256xf32>
    %30 = arith.addf %29, %28 : vector<1x256xf32>
    %cst_12 = arith.constant 1.000000e+00 : f32
    %31 = vector.broadcast %cst_12 : f32 to vector<1x256xf32>
    %32 = arith.divf %31, %30 : vector<1x256xf32>
    %33 = vector.broadcast %14 : vector<1x256xi32> to vector<8x256xi32>
    %34 = arith.cmpi eq, %6, %33 : vector<8x256xi32>
    %35 = vector.broadcast %26 : vector<1x256xi32> to vector<8x256xi32>
    %36 = arith.cmpi eq, %6, %35 : vector<8x256xi32>
    %37 = arith.mulf %28, %32 : vector<1x256xf32>
    %cst_13 = arith.constant 0.000000e+00 : f32
    %38 = vector.shape_cast %37 : vector<1x256xf32> to vector<1x256xf32>
    %39 = vector.broadcast %38 : vector<1x256xf32> to vector<8x256xf32>
    %40 = vector.broadcast %cst_13 : f32 to vector<8x256xf32>
    %41 = arith.select %36, %39, %40 : vector<8x256xi1>, vector<8x256xf32>
    %42 = vector.shape_cast %32 : vector<1x256xf32> to vector<1x256xf32>
    %43 = vector.broadcast %42 : vector<1x256xf32> to vector<8x256xf32>
    %44 = arith.select %34, %43, %41 : vector<8x256xi1>, vector<8x256xf32>
    %c0_14 = arith.constant 0 : index
    %c0_15 = arith.constant 0 : index
    %45 = vector.load %arg4[%c0_14, %c0_15] : memref<8x256xf32, #tpu.memory_space<vmem>>, vector<8x256xf32>
    tpu.vector_store %arg4[%c0_14, %c0_15], %44 {strides = array<i32>} : memref<8x256xf32, #tpu.memory_space<vmem>>, vector<8x256xf32>,
    %46 = tpu.concatenate %14, %26 in 0 : vector<1x256xi32>, vector<1x256xi32> -> vector<2x256xi32>
    %c0_16 = arith.constant 0 : index
    %c0_17 = arith.constant 0 : index
    %47 = vector.load %arg5[%c0_16, %c0_17] : memref<2x256xi32, #tpu.memory_space<vmem>>, vector<2x256xi32>
    tpu.vector_store %arg5[%c0_16, %c0_17], %46 {strides = array<i32>} : memref<2x256xi32, #tpu.memory_space<vmem>>, vector<2x256xi32>,
    return
  }
  func.func @transform_0(%arg0: i32) -> (i32, i32) {
    %c0_i32 = arith.constant 0 : i32
    %c0_i32_0 = arith.constant 0 : i32
    return %arg0, %c0_i32 : i32, i32
  }
  func.func @transform_1(%arg0: i32) -> (i32, i32) {
    %c0_i32 = arith.constant 0 : i32
    %c0_i32_0 = arith.constant 0 : i32
    %c0_i32_1 = arith.constant 0 : i32
    return %c0_i32, %c0_i32_0 : i32, i32
  }
  func.func @transform_2(%arg0: i32) -> (i32, i32) {
    %c0_i32 = arith.constant 0 : i32
    %c0_i32_0 = arith.constant 0 : i32
    %c0_i32_1 = arith.constant 0 : i32
    return %c0_i32, %c0_i32_0 : i32, i32
  }
  func.func @transform_3(%arg0: i32) -> (i32, i32) {
    %c0_i32 = arith.constant 0 : i32
    %c0_i32_0 = arith.constant 0 : i32
    return %c0_i32, %arg0 : i32, i32
  }
  func.func @transform_4(%arg0: i32) -> (i32, i32) {
    %c0_i32 = arith.constant 0 : i32
    %c0_i32_0 = arith.constant 0 : i32
    return %c0_i32, %arg0 : i32, i32
  }
}

</mosaic_0001>

<llo_original>
// kernel: tpu_custom_call.1
$region0: #{tpu_custom_call.1}
  #allocation0 [shape = 'u32[]', space=smem, size = 0x4, offset = 0x4, fixed_abs, tag = 'smem constant byte address 0x4 - core index']
  #allocation1 [shape = 'u32[72,128]{1,0:T(1,128)}', space=vmem, size = 0x9000, scoped, tag = 'internal scratch']
  %s0 = inlined_call_operand.vmem [shape: f32[512,32], index: 0, kind: input, shape index: {}]
  %s1 = inlined_call_operand.vmem [shape: f32[8,32], index: 1, kind: input, shape index: {}]
  %s2 = inlined_call_operand.vmem [shape: f32[8,1], index: 2, kind: input, shape index: {}]
  %s3 = inlined_call_operand.hbm [shape: f32[8,512], index: 3, kind: output, shape index: {0}]
  %s4 = inlined_call_operand.hbm [shape: s32[2,512], index: 4, kind: output, shape index: {1}]
  %5 = xla_tuple %s3, %s4
  %s6 = sld [smem:[#allocation0]]
  $region53: #{tpu_custom_call.1} parent=0
    _
  %s8 = ssub.s32 1, %s6
  %s9 = scalar_select 0, %s8, %s6
  $region1: #{tpu_custom_call.1} parent=0
    #allocation2 [shape = 'u8[16384]{0}', space=vmem, size = 0x4000, scoped, tag = 'output window, operand 0']
    #allocation3 [shape = 's32[2]{0}', space=sflag, size = 0x8, scoped, tag = 'scoped memory for tpu_custom_call.1']
    #allocation4 [shape = 'u8[4096]{0}', space=vmem, size = 0x1000, scoped, tag = 'output window, operand 1']
    #allocation5 [shape = 's32[2]{0}', space=sflag, size = 0x8, scoped, tag = 'scoped memory for tpu_custom_call.1']
    %10 = vsyncpa [#allocation3], 0
    %s11 = scalar_lea.sflag [#allocation3], 1
    %12 = vsyncpa %s11, 0
    %13 = vsyncpa [#allocation5], 0
    %s14 = scalar_lea.sflag [#allocation5], 1
    %15 = vsyncpa %s14, 0
    loop: start=0, step=1, limit=4
    $region2: #{tpu_custom_call.1} parent=1 // loop_pre_header
      _
    $region3: #{tpu_custom_call.1} parent=1 // loop_header
      %s17 = sphi 0, %s21
      %p18 = scmp.ge.s32.totalorder %s17, 4
      %s27 = sphi 0, %s29
      %s30 = sphi 0, %s27
      %s31 = sphi 0, %s30
      %s47 = sphi 0, %s31
      %s51 = sphi 0, %s51
      %s53 = sphi 0, %s51
      %s54 = sphi 0, %s53
      %s68 = sphi 0, %s54
      %s72 = sphi 0, %s72
      %s74 = sphi 0, %s72
      %s75 = sphi 0, %s74
      %s89 = sphi 0, %s75
      %s95 = sphi 0, %s97
      %s98 = sphi 0, %s95
      %s99 = sphi 0, %s98
      %s115 = sphi 0, %s99
      %s121 = sphi 0, %s123
      %s124 = sphi 0, %s121
      %s125 = sphi 0, %s124
      %s141 = sphi 0, %s125
    $region4: #{tpu_custom_call.1} parent=1 // loop_header_branch
      %20 = sbr.rel (%p18) target = $region8
    $region5: #{tpu_custom_call.1} parent=1 // loop_body
      %s22 = ssub.s32 %s17, 1
      %s23 = ssub.s32 %s17, 2
      %s24 = sadd.s32 %s17, 1
      %s25 = ssub.s32 %s17, %s24
      %p26 = scmp.eq.s32.totalorder %s25, 0
      %s28 = sadd.s32 %s27, 1
      %s29 = scalar_select %p26, %s27, %s28
      %p32 = pneg %p26
      %p33 = scmp.eq.s32.totalorder %s17, 1
      %p34 = por %p32, %p33
      %p35 = scmp.ne.s32.totalorder %s27, %s30
      %p36 = scmp.eq.s32.totalorder %s17, 0
      %p37 = por %p35, %p36
      %p38 = scmp.ne.s32.totalorder %s27, %s30
      %p39 = scmp.eq.s32.totalorder %s22, 1
      %p40 = por %p38, %p39
      %p41 = scmp.ne.s32.totalorder %s30, %s31
      %p42 = scmp.eq.s32.totalorder %s22, 0
      %p43 = por %p41, %p42
      %p44 = scmp.ne.s32.totalorder %s30, %s31
      %p45 = scmp.eq.s32.totalorder %s23, 1
      %p46 = por %p44, %p45
      %p48 = scmp.ne.s32.totalorder %s31, %s47
      %p49 = scmp.eq.s32.totalorder %s23, 0
      %p50 = por %p48, %p49
      %s52 = sadd.s32 %s51, 1
      %p55 = scmp.eq.s32.totalorder %s17, 1
      %p56 = scmp.ne.s32.totalorder %s51, %s53
      %p57 = scmp.eq.s32.totalorder %s17, 0
      %p58 = por %p56, %p57
      %p59 = scmp.ne.s32.totalorder %s51, %s53
      %p60 = scmp.eq.s32.totalorder %s22, 1
      %p61 = por %p59, %p60
      %p62 = scmp.ne.s32.totalorder %s53, %s54
      %p63 = scmp.eq.s32.totalorder %s22, 0
      %p64 = por %p62, %p63
      %p65 = scmp.ne.s32.totalorder %s53, %s54
      %p66 = scmp.eq.s32.totalorder %s23, 1
      %p67 = por %p65, %p66
      %p69 = scmp.ne.s32.totalorder %s54, %s68
      %p70 = scmp.eq.s32.totalorder %s23, 0
      %p71 = por %p69, %p70
      %s73 = sadd.s32 %s72, 1
      %p76 = scmp.eq.s32.totalorder %s17, 1
      %p77 = scmp.ne.s32.totalorder %s72, %s74
      %p78 = scmp.eq.s32.totalorder %s17, 0
      %p79 = por %p77, %p78
      %p80 = scmp.ne.s32.totalorder %s72, %s74
      %p81 = scmp.eq.s32.totalorder %s22, 1
      %p82 = por %p80, %p81
      %p83 = scmp.ne.s32.totalorder %s74, %s75
      %p84 = scmp.eq.s32.totalorder %s22, 0
      %p85 = por %p83, %p84
      %p86 = scmp.ne.s32.totalorder %s74, %s75
      %p87 = scmp.eq.s32.totalorder %s23, 1
      %p88 = por %p86, %p87
      %p90 = scmp.ne.s32.totalorder %s75, %s89
      %p91 = scmp.eq.s32.totalorder %s23, 0
      %p92 = por %p90, %p91
      %s93 = ssub.s32 %s17, %s24
      %p94 = scmp.eq.s32.totalorder %s93, 0
      %s96 = sadd.s32 %s95, 1
      %s97 = scalar_select %p94, %s95, %s96
      %p100 = pneg %p94
      %p101 = scmp.eq.s32.totalorder %s17, 1
      %p102 = por %p100, %p101
      %p103 = scmp.ne.s32.totalorder %s95, %s98
      %p104 = scmp.eq.s32.totalorder %s17, 0
      %p105 = por %p103, %p104
      %p106 = scmp.ne.s32.totalorder %s95, %s98
      %p107 = scmp.eq.s32.totalorder %s22, 1
      %p108 = por %p106, %p107
      %p109 = scmp.ne.s32.totalorder %s98, %s99
      %p110 = scmp.eq.s32.totalorder %s22, 0
      %p111 = por %p109, %p110
      %p112 = scmp.ne.s32.totalorder %s98, %s99
      %p113 = scmp.eq.s32.totalorder %s23, 1
      %p114 = por %p112, %p113
      %p116 = scmp.ne.s32.totalorder %s99, %s115
      %p117 = scmp.eq.s32.totalorder %s23, 0
      %p118 = por %p116, %p117
      %s119 = ssub.s32 %s17, %s24
      %p120 = scmp.eq.s32.totalorder %s119, 0
      %s122 = sadd.s32 %s121, 1
      %s123 = scalar_select %p120, %s121, %s122
      %p126 = pneg %p120
      %p127 = scmp.eq.s32.totalorder %s17, 1
      %p128 = por %p126, %p127
      %p129 = scmp.ne.s32.totalorder %s121, %s124
      %p130 = scmp.eq.s32.totalorder %s17, 0
      %p131 = por %p129, %p130
      %p132 = scmp.ne.s32.totalorder %s121, %s124
      %p133 = scmp.eq.s32.totalorder %s22, 1
      %p134 = por %p132, %p133
      %p135 = scmp.ne.s32.totalorder %s124, %s125
      %p136 = scmp.eq.s32.totalorder %s22, 0
      %p137 = por %p135, %p136
      %p138 = scmp.ne.s32.totalorder %s124, %s125
      %p139 = scmp.eq.s32.totalorder %s23, 1
      %p140 = por %p138, %p139
      %p142 = scmp.ne.s32.totalorder %s125, %s141
      %p143 = scmp.eq.s32.totalorder %s23, 0
      %p144 = por %p142, %p143
      %p145 = scmp.le.s32.totalorder 1, %s17
      %p146 = scmp.lt.s32.totalorder %s17, 3
      %p147 = pnand %p145, %p146
      %p148 = pneg %p147
      // Predicated region
      $region9: #{tpu_custom_call.1} parent=5 // pred_check
        _
      $region10: #{tpu_custom_call.1} parent=5 // pred_check_branch
        %150 = sbr.rel (%p147) target = $region12
      $region11: #{tpu_custom_call.1} parent=5 // pred_region
        %s151 = ssub.s32 %s17, 1
        // Predicated region
        $region13: #{tpu_custom_call.1} parent=11 // pred_check
          %p152 = pneg %p64
        $region14: #{tpu_custom_call.1} parent=11 // pred_check_branch
          %154 = sbr.rel (%p152) target = $region16
        $region15: #{tpu_custom_call.1} parent=11 // pred_region
          _
        $region16: #{tpu_custom_call.1} parent=11 // pred_fallthru
          _
        // Predicated region
        $region17: #{tpu_custom_call.1} parent=11 // pred_check
          %p155 = pneg %p85
        $region18: #{tpu_custom_call.1} parent=11 // pred_check_branch
          %157 = sbr.rel (%p155) target = $region20
        $region19: #{tpu_custom_call.1} parent=11 // pred_region
          _
        $region20: #{tpu_custom_call.1} parent=11 // pred_fallthru
          _
      $region12: #{tpu_custom_call.1} parent=5 // pred_fallthru
        _
      %p158 = scmp.lt.s32.totalorder %s17, 2
      // Predicated region
      $region21: #{tpu_custom_call.1} parent=5 // pred_check
        %p159 = pneg %p158
      $region22: #{tpu_custom_call.1} parent=5 // pred_check_branch
        %161 = sbr.rel (%p159) target = $region24
      $region23: #{tpu_custom_call.1} parent=5 // pred_region
        // Predicated region
        $region25: #{tpu_custom_call.1} parent=23 // pred_check
          %p162 = pneg %p37
        $region26: #{tpu_custom_call.1} parent=23 // pred_check_branch
          %164 = sbr.rel (%p162) target = $region28
        $region27: #{tpu_custom_call.1} parent=23 // pred_region
          %s165 = smul.u32 32, %s17
          %p166 = scmp.lt.s32.totalorder %s165, 63
          %s167 = scalar_select %p166, %s165, 63
          %s168 = smul.addr %s167, 8
          %s169 = scalar_lea.vmem %s0, %s168
          %s170 = smul.u32 32, %s17
        $region28: #{tpu_custom_call.1} parent=23 // pred_fallthru
          _
      $region24: #{tpu_custom_call.1} parent=5 // pred_fallthru
        _
      %p171 = scmp.le.s32.totalorder 1, %s17
      %p172 = scmp.lt.s32.totalorder %s17, 3
      %p173 = pnand %p171, %p172
      %p174 = pneg %p173
      // Predicated region
      $region29: #{tpu_custom_call.1} parent=5 // pred_check
        _
      $region30: #{tpu_custom_call.1} parent=5 // pred_check_branch
        %176 = sbr.rel (%p173) target = $region32
      $region31: #{tpu_custom_call.1} parent=5 // pred_region
        %s177 = ssub.s32 %s17, 1
        %s178 = smul.u32 32, %s22
        %p179 = scmp.lt.s32.totalorder %s178, 63
        %s180 = scalar_select %p179, %s178, 63
        %s181 = smul.addr %s180, 8
        %s182 = scalar_lea.vmem %s0, %s181
        %p183 = pneg %p43
        %p184 = pneg %p40
        %p185 = pneg %p64
        %p186 = pneg %p61
        %p187 = pneg %p85
        %p188 = pneg %p82
        %p189 = pneg %p111
        %p190 = pneg %p108
        %s191 = sand.u32 %s98, 1
        %s192 = scalar_lea.sflag [#allocation3], %s191
        %s193 = sand.u32 %s98, 1
        %s194 = smul.addr %s193, 16
        %s195 = scalar_lea.vmem [#allocation2], %s194
        %p196 = pneg %p137
        %p197 = pneg %p134
        %s198 = sand.u32 %s124, 1
        %s199 = scalar_lea.sflag [#allocation5], %s198
        %s200 = sand.u32 %s124, 1
        %s201 = smul.addr %s200, 4
        %s202 = scalar_lea.vmem [#allocation4], %s201
        %s203 = smul.u32 32, %s22
        %p204 = scmp.lt.s32.totalorder %s203, 63
        %s205 = scalar_select %p204, %s203, 63
        %s206 = smul.addr %s205, 8
        %s207 = scalar_lea.vmem %s0, %s206
        %s208 = smul.u32 32, %s22
        %s209 = smul.u32 2, %s22
        %s210 = smul.u32 2, %s22
        %v211 = vld [vmem:[%s1] sm:$0xff]
        %v212 = vld [vmem:[%s207] sm:$0xff]
        %v213 = vld [vmem:[%s207 + $0x8] sm:$0xff]
        %v214 = vld [vmem:[%s207 + $0x10] sm:$0xff]
        %v215 = vld [vmem:[%s207 + $0x18] sm:$0xff]
        %v216 = vld [vmem:[%s207 + $0x20] sm:$0xff]
        %v217 = vld [vmem:[%s207 + $0x28] sm:$0xff]
        %v218 = vld [vmem:[%s207 + $0x30] sm:$0xff]
        %v219 = vld [vmem:[%s207 + $0x38] sm:$0xff]
        %v220 = vld [vmem:[%s207 + $0x40] sm:$0xff]
        %v221 = vld [vmem:[%s207 + $0x48] sm:$0xff]
        %v222 = vld [vmem:[%s207 + $0x50] sm:$0xff]
        %v223 = vld [vmem:[%s207 + $0x58] sm:$0xff]
        %v224 = vld [vmem:[%s207 + $0x60] sm:$0xff]
        %v225 = vld [vmem:[%s207 + $0x68] sm:$0xff]
        %v226 = vld [vmem:[%s207 + $0x70] sm:$0xff]
        %v227 = vld [vmem:[%s207 + $0x78] sm:$0xff]
        %v228 = vld [vmem:[%s207 + $0x80] sm:$0xff]
        %v229 = vld [vmem:[%s207 + $0x88] sm:$0xff]
        %v230 = vld [vmem:[%s207 + $0x90] sm:$0xff]
        %v231 = vld [vmem:[%s207 + $0x98] sm:$0xff]
        %v232 = vld [vmem:[%s207 + $0xa0] sm:$0xff]
        %v233 = vld [vmem:[%s207 + $0xa8] sm:$0xff]
        %v234 = vld [vmem:[%s207 + $0xb0] sm:$0xff]
        %v235 = vld [vmem:[%s207 + $0xb8] sm:$0xff]
        %v236 = vld [vmem:[%s207 + $0xc0] sm:$0xff]
        %v237 = vld [vmem:[%s207 + $0xc8] sm:$0xff]
        %v238 = vld [vmem:[%s207 + $0xd0] sm:$0xff]
        %v239 = vld [vmem:[%s207 + $0xd8] sm:$0xff]
        %v240 = vld [vmem:[%s207 + $0xe0] sm:$0xff]
        %v241 = vld [vmem:[%s207 + $0xe8] sm:$0xff]
        %v242 = vld [vmem:[%s207 + $0xf0] sm:$0xff]
        %v243 = vld [vmem:[%s207 + $0xf8] sm:$0xff]
        %v244 = vld [vmem:[%s2] sm:$0xff]
        %246 = vset.pattern.permute.xlu0 0
        %247 = vperm.xlu0 %246, %v244
        %v248 = vpop.permute.xlu0 %247
        %vm250 = vcmask 261120
        %v252 = vsel %vm250, %v211, 0
        %v255 = vsel %vm250, %v212, 0
        %v258 = vsel %vm250, %v213, 0
        %v261 = vsel %vm250, %v214, 0
        %v264 = vsel %vm250, %v215, 0
        %v267 = vsel %vm250, %v216, 0
        %v270 = vsel %vm250, %v217, 0
        %v273 = vsel %vm250, %v218, 0
        %v276 = vsel %vm250, %v219, 0
        %v279 = vsel %vm250, %v220, 0
        %v282 = vsel %vm250, %v221, 0
        %v285 = vsel %vm250, %v222, 0
        %v288 = vsel %vm250, %v223, 0
        %v291 = vsel %vm250, %v224, 0
        %v294 = vsel %vm250, %v225, 0
        %v297 = vsel %vm250, %v226, 0
        %v300 = vsel %vm250, %v227, 0
        %v303 = vsel %vm250, %v228, 0
        %v306 = vsel %vm250, %v229, 0
        %v309 = vsel %vm250, %v230, 0
        %v312 = vsel %vm250, %v231, 0
        %v315 = vsel %vm250, %v232, 0
        %v318 = vsel %vm250, %v233, 0
        %v321 = vsel %vm250, %v234, 0
        %v324 = vsel %vm250, %v235, 0
        %v327 = vsel %vm250, %v236, 0
        %v330 = vsel %vm250, %v237, 0
        %v333 = vsel %vm250, %v238, 0
        %v336 = vsel %vm250, %v239, 0
        %v339 = vsel %vm250, %v240, 0
        %v342 = vsel %vm250, %v241, 0
        %v345 = vsel %vm250, %v242, 0
        %v348 = vsel %vm250, %v243, 0
        %350 = vmatpush.xpose.msra.mxu0 %v300
        %351 = vmatpush.xpose.msra.mxu0 %v297
        %352 = vmatpush.xpose.msra.mxu0 %v294
        %353 = vmatpush.xpose.msra.mxu0 %v291
        %354 = vmatpush.xpose.msra.mxu0 %v288
        %355 = vmatpush.xpose.msra.mxu0 %v285
        %356 = vmatpush.xpose.msra.mxu0 %v282
        %357 = vmatpush.xpose.msra.mxu0 %v279
        %358 = vmatpush.xpose.msra.mxu0 %v276
        %359 = vmatpush.xpose.msra.mxu0 %v273
        %360 = vmatpush.xpose.msra.mxu0 %v270
        %361 = vmatpush.xpose.msra.mxu0 %v267
        %362 = vmatpush.xpose.msra.mxu0 %v264
        %363 = vmatpush.xpose.msra.mxu0 %v261
        %364 = vmatpush.xpose.msra.mxu0 %v258
        %365 = vmatpush.xpose.msra.mxu0 %v255
        %366 = vmatmul.f32.gmra.mxu0 %v252
        %v367 = vpop.f32.mrf.mxu0
        %v368 = vadd.f32 %v248, %v367
        %369 = vdwg.mxu0
        %370 = vmatpush.xpose.msra.mxu0 %v348
        %371 = vmatpush.xpose.msra.mxu0 %v345
        %372 = vmatpush.xpose.msra.mxu0 %v342
        %373 = vmatpush.xpose.msra.mxu0 %v339
        %374 = vmatpush.xpose.msra.mxu0 %v336
        %375 = vmatpush.xpose.msra.mxu0 %v333
        %376 = vmatpush.xpose.msra.mxu0 %v330
        %377 = vmatpush.xpose.msra.mxu0 %v327
        %378 = vmatpush.xpose.msra.mxu0 %v324
        %379 = vmatpush.xpose.msra.mxu0 %v321
        %380 = vmatpush.xpose.msra.mxu0 %v318
        %381 = vmatpush.xpose.msra.mxu0 %v315
        %382 = vmatpush.xpose.msra.mxu0 %v312
        %383 = vmatpush.xpose.msra.mxu0 %v309
        %384 = vmatpush.xpose.msra.mxu0 %v306
        %385 = vmatpush.xpose.msra.mxu0 %v303
        %386 = vmatmul.f32.gmra.mxu0 %v252
        %v387 = vpop.f32.mrf.mxu0
        %v388 = vadd.f32 %v248, %v387
        %389 = vdwg.mxu0
        %v390 = vlaneseq
        %v391 = vshrl.u32 %v390, 7
        %v392 = vrot.slane %v368, 4
        %v393 = vmax.f32 %v368, %v392
        %v394 = vrot.slane %v393, 2
        %v395 = vmax.f32 %v393, %v394
        %v396 = vrot.slane %v395, 1
        %v397 = vmax.f32 %v395, %v396
        %v398 = vrot.slane %v388, 4
        %v399 = vmax.f32 %v388, %v398
        %v400 = vrot.slane %v399, 2
        %v401 = vmax.f32 %v399, %v400
        %v402 = vrot.slane %v401, 1
        %v403 = vmax.f32 %v401, %v402
        %vm404 = vcmp.eq.f32.partialorder %v368, %v397
        %vm405 = vcmp.eq.f32.partialorder %v388, %v403
        %v406 = vsel %vm404, %v391, 8
        %v407 = vsel %vm405, %v391, 8
        %v408 = vrot.slane %v406, 4
        %vm409 = vcmp.lt.s32.totalorder %v406, %v408
        %v410 = vsel %vm409, %v406, %v408
        %v411 = vrot.slane %v410, 2
        %vm412 = vcmp.lt.s32.totalorder %v410, %v411
        %v413 = vsel %vm412, %v410, %v411
        %v414 = vrot.slane %v413, 1
        %vm415 = vcmp.lt.s32.totalorder %v413, %v414
        %v416 = vsel %vm415, %v413, %v414
        %v417 = vrot.slane %v407, 4
        %vm418 = vcmp.lt.s32.totalorder %v407, %v417
        %v419 = vsel %vm418, %v407, %v417
        %v420 = vrot.slane %v419, 2
        %vm421 = vcmp.lt.s32.totalorder %v419, %v420
        %v422 = vsel %vm421, %v419, %v420
        %v423 = vrot.slane %v422, 1
        %vm424 = vcmp.lt.s32.totalorder %v422, %v423
        %v425 = vsel %vm424, %v422, %v423
        %vm426 = vcmp.eq.s32.totalorder %v391, %v416
        %vm427 = vcmp.eq.s32.totalorder %v391, %v425
        %v428 = vsel %vm426, -inf, %v368
        %v429 = vsel %vm427, -inf, %v388
        %v430 = vrot.slane %v428, 4
        %v431 = vmax.f32 %v428, %v430
        %v432 = vrot.slane %v431, 2
        %v433 = vmax.f32 %v431, %v432
        %v434 = vrot.slane %v433, 1
        %v435 = vmax.f32 %v433, %v434
        %v436 = vrot.slane %v429, 4
        %v437 = vmax.f32 %v429, %v436
        %v438 = vrot.slane %v437, 2
        %v439 = vmax.f32 %v437, %v438
        %v440 = vrot.slane %v439, 1
        %v441 = vmax.f32 %v439, %v440
        %vm442 = vcmp.eq.f32.partialorder %v428, %v435
        %vm443 = vcmp.eq.f32.partialorder %v429, %v441
        %v444 = vsel %vm442, %v391, 8
        %v445 = vsel %vm443, %v391, 8
        %v446 = vrot.slane %v444, 4
        %vm447 = vcmp.lt.s32.totalorder %v444, %v446
        %v448 = vsel %vm447, %v444, %v446
        %v449 = vrot.slane %v448, 2
        %vm450 = vcmp.lt.s32.totalorder %v448, %v449
        %v451 = vsel %vm450, %v448, %v449
        %v452 = vrot.slane %v451, 1
        %vm453 = vcmp.lt.s32.totalorder %v451, %v452
        %v454 = vsel %vm453, %v451, %v452
        %v455 = vrot.slane %v445, 4
        %vm456 = vcmp.lt.s32.totalorder %v445, %v455
        %v457 = vsel %vm456, %v445, %v455
        %v458 = vrot.slane %v457, 2
        %vm459 = vcmp.lt.s32.totalorder %v457, %v458
        %v460 = vsel %vm459, %v457, %v458
        %v461 = vrot.slane %v460, 1
        %vm462 = vcmp.lt.s32.totalorder %v460, %v461
        %v463 = vsel %vm462, %v460, %v461
        %v464 = vsub.f32 %v435, %v397
        %v465 = vsub.f32 %v441, %v403
        %v466 = vmul.f32 %v464, 1.442695
        %v467 = vpow.pop %v466
        %v468 = vmul.f32 %v465, 1.442695
        %v469 = vpow.pop %v468
        %v470 = vadd.f32 %v467, 1.0
        %v471 = vadd.f32 %v469, 1.0
        %v472 = vrcp.pop %v470
        %v473 = vmul.f32 %v470, %v472
        %v474 = vsub.f32 1.0, %v473
        %v475 = vmul.f32 %v472, %v474
        %v476 = vadd.f32 %v472, %v475
        %vm477 = vweird.f32 %v470
        %vm478 = vweird.f32 %v472
        %vm479 = vmor %vm477, %vm478
        %v480 = vsel %vm479, %v472, %v476
        %v481 = vand.u32 2147483647, %v470
        %vm482 = vcmp.eq.f32.partialorder %v481, 8.507059e+37
        %v483 = vand.u32 %v470, 2147483648
        %v484 = vor.u32 1.1754944e-38, %v483
        %v485 = vsel %vm482, %v484, %v480
        %v486 = vmul.f32 1.0, %v485
        %v487 = vrcp.pop %v471
        %v488 = vmul.f32 %v471, %v487
        %v489 = vsub.f32 1.0, %v488
        %v490 = vmul.f32 %v487, %v489
        %v491 = vadd.f32 %v487, %v490
        %vm492 = vweird.f32 %v471
        %vm493 = vweird.f32 %v487
        %vm494 = vmor %vm492, %vm493
        %v495 = vsel %vm494, %v487, %v491
        %v496 = vand.u32 2147483647, %v471
        %vm497 = vcmp.eq.f32.partialorder %v496, 8.507059e+37
        %v498 = vand.u32 %v471, 2147483648
        %v499 = vor.u32 1.1754944e-38, %v498
        %v500 = vsel %vm497, %v499, %v495
        %v501 = vmul.f32 1.0, %v500
        %vm502 = vcmp.eq.s32.totalorder %v391, %v454
        %vm503 = vcmp.eq.s32.totalorder %v391, %v463
        %v504 = vmul.f32 %v467, %v486
        %v505 = vmul.f32 %v469, %v501
        %v506 = vsel %vm502, %v504, 0.0
        %v507 = vsel %vm503, %v505, 0.0
        %v508 = vsel %vm426, %v486, %v506
        %v509 = vsel %vm427, %v501, %v507
        %510 = vst [vmem:[%s195] sm:$0xff] %v508
        %511 = vst [vmem:[%s195 + $0x8] sm:$0xff] %v509
        %vm512 = vcmask 1040384
        %v513 = vsel %vm512, %v416, %v454
        %v514 = vsel %vm512, %v425, %v463
        %v515 = vrot.slane %v514, 6
        %vm516 = vcmask 1041408
        %v517 = vsel %vm516, %v513, %v515
        %518 = vst [vmem:[%s202] sm:$0xf] %v517
        %s519 = sand.u32 %s98, 1
        %s520 = scalar_lea.sflag [#allocation3], %s519
        %s521 = sand.u32 %s98, 1
        %s522 = smul.addr %s521, 16
        %s523 = scalar_lea.vmem [#allocation2], %s522
        %s524 = sand.u32 %s124, 1
        %s525 = scalar_lea.sflag [#allocation5], %s524
        %s526 = sand.u32 %s124, 1
        %s527 = smul.addr %s526, 4
        %s528 = scalar_lea.vmem [#allocation4], %s527
        // Predicated region
        $region33: #{tpu_custom_call.1} parent=31 // pred_check
          %p529 = pneg %p108
        $region34: #{tpu_custom_call.1} parent=31 // pred_check_branch
          %531 = sbr.rel (%p529) target = $region36
        $region35: #{tpu_custom_call.1} parent=31 // pred_region
          %s532 = smul.u32 2, %s22
          %534 = vsyncadd %s520, 0
          %s535 = smul.addr %s532, 8
          %s536 = scalar_lea.hbm %s3, %s535
          %s538 = sshll.u32 %s523, 4
          %s539 = int_to_ptr.vmem [resolvable:$true] %s538
          %s540 = sshll.u32 %s536, 4
          %s541 = int_to_ptr.hbm [resolvable:$true] %s540
          %543 = dma.vmem_to_hbm [thread:$0]  %s539, 256, %s541, %s520
        $region36: #{tpu_custom_call.1} parent=31 // pred_fallthru
          _
        // Predicated region
        $region37: #{tpu_custom_call.1} parent=31 // pred_check
          %p544 = pneg %p134
        $region38: #{tpu_custom_call.1} parent=31 // pred_check_branch
          %546 = sbr.rel (%p544) target = $region40
        $region39: #{tpu_custom_call.1} parent=31 // pred_region
          %s547 = smul.u32 2, %s22
          %549 = vsyncadd %s525, 0
          %s550 = smul.addr %s547, 2
          %s551 = scalar_lea.hbm %s4, %s550
          %s553 = sshll.u32 %s528, 4
          %s554 = int_to_ptr.vmem [resolvable:$true] %s553
          %s555 = sshll.u32 %s551, 4
          %s556 = int_to_ptr.hbm [resolvable:$true] %s555
          %558 = dma.vmem_to_hbm [thread:$0]  %s554, 64, %s556, %s525
        $region40: #{tpu_custom_call.1} parent=31 // pred_fallthru
          _
      $region32: #{tpu_custom_call.1} parent=5 // pred_fallthru
        _
      %p559 = scmp.le.s32.totalorder 2, %s17
      // Predicated region
      $region41: #{tpu_custom_call.1} parent=5 // pred_check
        %p560 = pneg %p559
      $region42: #{tpu_custom_call.1} parent=5 // pred_check_branch
        %562 = sbr.rel (%p560) target = $region44
      $region43: #{tpu_custom_call.1} parent=5 // pred_region
        %s563 = ssub.s32 %s17, 2
        // Predicated region
        $region45: #{tpu_custom_call.1} parent=43 // pred_check
          %p564 = pneg %p114
        $region46: #{tpu_custom_call.1} parent=43 // pred_check_branch
          %566 = sbr.rel (%p564) target = $region48
        $region47: #{tpu_custom_call.1} parent=43 // pred_region
          %s567 = sand.u32 %s99, 1
          %s568 = scalar_lea.sflag [#allocation3], %s567
          %s569 = sand.u32 %s99, 1
          %s570 = smul.addr %s569, 16
          %s571 = scalar_lea.vmem [#allocation2], %s570
          %573 = dma.done %s568, 256
        $region48: #{tpu_custom_call.1} parent=43 // pred_fallthru
          _
        // Predicated region
        $region49: #{tpu_custom_call.1} parent=43 // pred_check
          %p574 = pneg %p140
        $region50: #{tpu_custom_call.1} parent=43 // pred_check_branch
          %576 = sbr.rel (%p574) target = $region52
        $region51: #{tpu_custom_call.1} parent=43 // pred_region
          %s577 = sand.u32 %s125, 1
          %s578 = scalar_lea.sflag [#allocation5], %s577
          %s579 = sand.u32 %s125, 1
          %s580 = smul.addr %s579, 4
          %s581 = scalar_lea.vmem [#allocation4], %s580
          %583 = dma.done %s578, 64
        $region52: #{tpu_custom_call.1} parent=43 // pred_fallthru
          _
      $region44: #{tpu_custom_call.1} parent=5 // pred_fallthru
        _
    $region6: #{tpu_custom_call.1} parent=1 // loop_footer
      %s21 = sadd.s32 1, %s17
    $region7: #{tpu_custom_call.1} parent=1 // loop_footer_branch
      %16 = sbr.rel target = $region3
    $region8: #{tpu_custom_call.1} parent=1 // loop_exit
      _
    %584 = vsyncpa [#allocation3], 1
    %s585 = scalar_lea.sflag [#allocation3], 1
    %586 = vsyncpa %s585, 1
    %587 = vsyncpa [#allocation5], 1
    %s588 = scalar_lea.sflag [#allocation5], 1
    %589 = vsyncpa %s588, 1

</llo_original>
